<compile_context>
chip_gen: v7x
topology: tpu7x:2x2x1
jax: 0.10.0
libtpu: 0.0.40
codegen_flags: <defaults>
</compile_context>

<pallas_src>
import functools

import jax
import jax.numpy as jnp
from jax import lax
from jax.experimental import pallas as pl
from jax.experimental.pallas import tpu as pltpu


# ----------------------------------------------------------------------------
# Kernel
# ----------------------------------------------------------------------------
def _dilated_bottleneck_kernel(x_ref, w_ref, out_ref, *, cb_pad, cout, k_taps,
                               dilation, seq_len, cw1, cw2, eps):
  rows_in, NL = x_ref.shape              # rows_in = 8 + cout

  x_all = x_ref[...]                     # [bias block (8) | residual slab (cout)]
  bias_blk = x_all[:8]                   # row 0 = ones, rows 1..7 = 0
  res = x_all[8:]                        # (cout, NL)

  W = w_ref[...]
  wb = W[:cb_pad, :rows_in]              # bottleneck weight, bb folded in col 0
  wd = W[:cout, cw1:cw1 + k_taps * cb_pad + 8]   # dilated weight, bd folded
  gamma = W[:cout, cw1 + cw2:cw1 + cw2 + 1]
  beta = W[:cout, cw1 + cw2 + 1:cw1 + cw2 + 2]

  # grouped 1x1 bottleneck conv (+bias) as one dense block-diagonal matmul
  h = jnp.dot(wb, x_all, preferred_element_type=jnp.float32)   # (cb_pad, NL)

  # im2col for the grouped dilated conv: K rolled+masked copies of h (XLU
  # rolls, 8-row-aligned pieces) + the ones/bias block, stacked on sublanes.
  pad = (k_taps - 1) // 2 * dilation
  pos = lax.broadcasted_iota(jnp.int32, (1, NL), 1) % seq_len   # pos in sample
  pieces = []
  for k in range(k_taps):                # static unroll over taps
    s = k * dilation - pad
    if s == 0:
      pieces.append(h)
    else:
      rolled = pltpu.roll(h, (-s) % NL, axis=1)        # shifted[p] = h[p + s]
      keep = jnp.logical_and(pos + s >= 0, pos + s < seq_len)   # zero pad edge
      pieces.append(jnp.where(keep, rolled, 0.0))
  pieces.append(bias_blk)                # folds bd into the matmul
  stack = jnp.concatenate(pieces, axis=0)              # (k_taps*cb_pad+8, NL)

  # dilated grouped conv (+bias) as ONE deep matmul
  y = jnp.dot(wd, stack, preferred_element_type=jnp.float32)   # (cout, NL)

  # ReLU + residual
  z = jnp.maximum(y, 0.0) + res

  # BatchNorm1d (batch stats, biased var), single pass, folded into 1 affine
  denom = 1.0 / float(NL)
  mu = jnp.sum(z, axis=1, keepdims=True) * denom
  ex2 = jnp.sum(z * z, axis=1, keepdims=True) * denom
  var = jnp.maximum(ex2 - mu * mu, 0.0)
  inv = lax.rsqrt(var + eps)
  scale = gamma * inv
  shift = beta - mu * scale
  out_ref[...] = (z * scale + shift).astype(out_ref.dtype)


# ----------------------------------------------------------------------------
# Parameter packing (runs once per parameter set, OUT of the forward path)
# ----------------------------------------------------------------------------
def _round_up(a, m):
  return (a + m - 1) // m * m


def _block_diag(w, groups):
  """(Co, Ci_g) grouped weight -> dense block-diagonal (Co, Ci_g*groups)."""
  Co, Cig = w.shape
  cog = Co // groups
  rows = []
  for g in range(groups):
    blk = w[g * cog:(g + 1) * cog]
    rows.append(jnp.concatenate(
        [jnp.zeros((cog, g * Cig), w.dtype), blk,
         jnp.zeros((cog, (groups - 1 - g) * Cig), w.dtype)], axis=1))
  return jnp.concatenate(rows, axis=0)


def pack_params(params, *, in_channel, out_channel, bottleneck, kernel_size,
                dilation, groups, firstlayergroups=None):
  """Pack all module parameters into one f32 slab with 128-aligned segments."""
  wb, bb, wd, bd, gamma, beta = params
  Cin, Cout, Cb, K = in_channel, out_channel, bottleneck, kernel_size
  gd = firstlayergroups if firstlayergroups else groups
  rep = 2 if firstlayergroups else 1
  if rep == 1:
    assert Cin == Cout, "identity residual requires in_channel == out_channel"
  else:
    assert Cout == rep * Cin

  cb_pad = _round_up(Cb, 8)
  rows = _round_up(max(cb_pad, Cout), 8)
  x_rows = 8 + Cout                       # bias block + residual slab height
  cw1 = _round_up(x_rows, 128)            # segment 0 width (bottleneck conv)
  cw2 = _round_up(K * cb_pad + 8, 128)    # segment 1 width (dilated conv)

  W = jnp.zeros((rows, cw1 + cw2 + 2), jnp.float32)
  # segment 0 [0, cw1): bottleneck 1x1 grouped conv. col 0 = bias (hits the
  # ones row of the x slab); cols [8, 8+Cin) = block-diagonal weight; cols
  # [8+Cin, 8+Cout) stay zero so the matmul can consume the full x slab
  # (repeated residual rows included) without any sublane-unaligned slicing.
  W = W.at[:Cb, 0].set(bb)
  W = W.at[:Cb, 8:8 + Cin].set(_block_diag(wb[:, :, 0], groups))
  # segment 1 [cw1, cw1+cw2): dilated grouped conv over the K-tap im2col
  # stack; column cw1 + K*cb_pad = bias column (multiplies the ones row).
  for k in range(K):
    wk = _block_diag(wd[:, :, k], gd)                   # (Cout, Cb)
    W = W.at[:Cout, cw1 + k * cb_pad:cw1 + k * cb_pad + Cb].set(wk)
  W = W.at[:Cout, cw1 + K * cb_pad].set(bd)
  # segment 2: BN affine (gamma, beta)
  W = W.at[:Cout, cw1 + cw2].set(gamma)
  W = W.at[:Cout, cw1 + cw2 + 1].set(beta)

  meta = dict(in_channel=Cin, out_channel=Cout, cb_pad=cb_pad, k_taps=K,
              dilation=dilation, rep=rep, cw1=cw1, cw2=cw2)
  return W, meta


# ----------------------------------------------------------------------------
# Forward builder (jitted forward: layout plumbing + ONE pallas_call)
# ----------------------------------------------------------------------------
def make_dilated_bottleneck_block(params, *, groups, kernel_size, dilation,
                                  firstlayergroups=None, eps=1e-5):
  """Packs params once; returns a jitted forward(x) for x: (N, Cin, L) f32."""
  wb, bb, wd, bd, gamma, beta = params
  Cb, Cin_g, _ = wb.shape
  Cin = Cin_g * groups
  Cout, _, K = wd.shape
  assert K == kernel_size

  W_packed, meta = pack_params(
      params, in_channel=Cin, out_channel=Cout, bottleneck=Cb, kernel_size=K,
      dilation=dilation, groups=groups, firstlayergroups=firstlayergroups)
  cb_pad, cout = meta["cb_pad"], meta["out_channel"]
  rep, cw1, cw2 = meta["rep"], meta["cw1"], meta["cw2"]

  def forward_impl(x, w_packed):
    N, cin_x, L = x.shape
    assert cin_x == Cin
    assert L % 128 == 0, "L must be a multiple of 128 (lane-dense batch fold)"
    NL = N * L

    # ---- wrapper-side layout plumbing: lane-dense batch fold + bias block
    # ---- + pre-repeated residual (all nearly free XLA ops). ----
    xt = jnp.transpose(x, (1, 0, 2)).reshape(Cin, NL)
    bias_blk = jnp.zeros((8, NL), jnp.float32).at[0, :].set(1.0)
    slab = jnp.concatenate([bias_blk] + [xt] * rep, axis=0)   # (8+Cout, NL)

    kernel = functools.partial(
        _dilated_bottleneck_kernel, cb_pad=cb_pad, cout=cout, k_taps=K,
        dilation=dilation, seq_len=L, cw1=cw1, cw2=cw2, eps=eps)

    flops = 2 * NL * (cb_pad * (8 + cout) + cout * (K * cb_pad + 8)) \
        + 8 * cout * NL
    bytes_accessed = 4 * ((8 + cout) * NL + w_packed.size + cout * NL)

    out2 = pl.pallas_call(
        kernel,
        out_shape=jax.ShapeDtypeStruct((cout, NL), jnp.float32),
        in_specs=[pl.BlockSpec(memory_space=pltpu.MemorySpace.VMEM)] * 2,
        out_specs=pl.BlockSpec(memory_space=pltpu.MemorySpace.VMEM),
        cost_estimate=pl.CostEstimate(flops=flops, transcendentals=cout,
                                      bytes_accessed=bytes_accessed),
    )(slab, w_packed)

    return jnp.transpose(out2.reshape(cout, N, L), (1, 0, 2))

  fwd = jax.jit(forward_impl)
  return lambda x: fwd(x, W_packed)


# ----------------------------------------------------------------------------
# Init + pure-JAX reference (verification only)
# ----------------------------------------------------------------------------
def init_params(key, cfg):
  """Deterministic, PyTorch-default-style uniform init of the module params."""
  Cin, Cout = cfg["in_channel"], cfg["out_channel"]
  Cb, K = cfg["bottleneck"], cfg["kernel_size"]
  gb = cfg["groups"]
  gd = cfg["firstlayergroups"] or gb
  k1, k2, k3, k4 = jax.random.split(key, 4)
  b1 = 1.0 / ((Cin // gb * 1) ** 0.5)
  b2 = 1.0 / ((Cb // gd * K) ** 0.5)
  wb = jax.random.uniform(k1, (Cb, Cin // gb, 1), jnp.float32, -b1, b1)
  bb = jax.random.uniform(k2, (Cb,), jnp.float32, -b1, b1)
  wd = jax.random.uniform(k3, (Cout, Cb // gd, K), jnp.float32, -b2, b2)
  bd = jax.random.uniform(k4, (Cout,), jnp.float32, -b2, b2)
  gamma = jnp.ones((Cout,), jnp.float32)
  beta = jnp.zeros((Cout,), jnp.float32)
  return wb, bb, wd, bd, gamma, beta


def reference(x, params, cfg):
  """Pure-JAX reference matching the PyTorch forward."""
  wb, bb, wd, bd, gamma, beta = params
  gb = cfg["groups"]
  gd = cfg["firstlayergroups"] or gb
  pad = (cfg["kernel_size"] - 1) // 2 * cfg["dilation"]
  dn = ("NCH", "OIH", "NCH")
  h = lax.conv_general_dilated(x, wb, (1,), [(0, 0)], dimension_numbers=dn,
                               feature_group_count=gb) + bb[None, :, None]
  y = lax.conv_general_dilated(h, wd, (1,), [(pad, pad)],
                               rhs_dilation=(cfg["dilation"],),
                               dimension_numbers=dn,
                               feature_group_count=gd) + bd[None, :, None]
  resid = jnp.tile(x, (1, 2, 1)) if cfg["firstlayergroups"] else x
  z = jnp.maximum(y, 0.0) + resid
  mu = z.mean(axis=(0, 2), keepdims=True)
  var = ((z - mu) ** 2).mean(axis=(0, 2), keepdims=True)
  zn = (z - mu) / jnp.sqrt(var + 1e-5)
  return gamma[None, :, None] * zn + beta[None, :, None]


if __name__ == "__main__":
  root_key = jax.random.PRNGKey(0)
  configs = [
      # residual path (firstlayergroups=None): needs in_channel == out_channel
      dict(N=2, L=128, in_channel=8, out_channel=8, bottleneck=4,
           kernel_size=15, dilation=2, groups=2, firstlayergroups=None),
      # first-layer path: residual is x.repeat(1, 2, 1)
      dict(N=2, L=128, in_channel=4, out_channel=8, bottleneck=4,
           kernel_size=15, dilation=1, groups=2, firstlayergroups=2),
  ]
  for idx, cfg in enumerate(configs):
    kx, kp = jax.random.split(jax.random.fold_in(root_key, idx))
    x = jax.random.normal(kx, (cfg["N"], cfg["in_channel"], cfg["L"]),
                          jnp.float32)
    params = init_params(kp, cfg)
    fwd = make_dilated_bottleneck_block(
        params, groups=cfg["groups"], kernel_size=cfg["kernel_size"],
        dilation=cfg["dilation"], firstlayergroups=cfg["firstlayergroups"])
    out = jax.block_until_ready(fwd(x))
    ref = reference(x, params, cfg)
    assert out.shape == ref.shape == (cfg["N"], cfg["out_channel"], cfg["L"])
    max_err = float(jnp.max(jnp.abs(out - ref)))
    assert max_err < 2e-3, f"config {idx}: max abs err {max_err}"
  print("KERNEL_OK")
</pallas_src>

<mosaic_0001>
module attributes {stable_mosaic.version = 11 : i64} {
  func.func @_dilated_bottleneck_kernel(%arg0: memref<16x256xf32, #tpu.memory_space<vmem>>, %arg1: memref<8x258xf32, #tpu.memory_space<vmem>>, %arg2: memref<8x256xf32, #tpu.memory_space<vmem>>) attributes {dimension_semantics = [], scalar_prefetch = 0 : i64, scratch_operands = 0 : i64, tpu.core_type = #tpu.core_type<tc>} {
    %c0 = arith.constant 0 : index
    %c0_0 = arith.constant 0 : index
    %0 = vector.load %arg0[%c0, %c0_0] : memref<16x256xf32, #tpu.memory_space<vmem>>, vector<16x256xf32>
    %1 = vector.extract_strided_slice %0 {offsets = [0, 0], sizes = [8, 256], strides = [1, 1]} : vector<16x256xf32> to vector<8x256xf32>
    %2 = vector.extract_strided_slice %0 {offsets = [8, 0], sizes = [8, 256], strides = [1, 1]} : vector<16x256xf32> to vector<8x256xf32>
    %c0_1 = arith.constant 0 : index
    %c0_2 = arith.constant 0 : index
    %3 = vector.load %arg1[%c0_1, %c0_2] : memref<8x258xf32, #tpu.memory_space<vmem>>, vector<8x258xf32>
    %4 = vector.extract_strided_slice %3 {offsets = [0, 0], sizes = [8, 16], strides = [1, 1]} : vector<8x258xf32> to vector<8x16xf32>
    %5 = vector.extract_strided_slice %3 {offsets = [0, 128], sizes = [8, 128], strides = [1, 1]} : vector<8x258xf32> to vector<8x128xf32>
    %6 = vector.extract_strided_slice %3 {offsets = [0, 256], sizes = [8, 1], strides = [1, 1]} : vector<8x258xf32> to vector<8x1xf32>
    %7 = vector.extract_strided_slice %3 {offsets = [0, 257], sizes = [8, 1], strides = [1, 1]} : vector<8x258xf32> to vector<8x1xf32>
    %cst = arith.constant dense<0.000000e+00> : vector<8x256xf32>
    %8 = tpu.matmul %4, %0, %cst {dimension_numbers = #tpu.dot_dimension_numbers<[1], [0], [0], [1], [0, 0, 1, 1], [], []>} : vector<8x16xf32>, vector<16x256xf32>, vector<8x256xf32> -> vector<8x256xf32>
    %9 = tpu.iota {dimensions = array<i32: 1>} : vector<1x256xi32>
    %c128_i32 = arith.constant 128 : i32
    %c0_i32 = arith.constant 0 : i32
    %10 = arith.cmpi eq, %c128_i32, %c0_i32 : i32
    %c1_i32 = arith.constant 1 : i32
    %11 = arith.select %10, %c1_i32, %c128_i32 : i32
    %12 = vector.broadcast %11 : i32 to vector<1x256xi32>
    %13 = arith.remsi %9, %12 : vector<1x256xi32>
    %c0_i32_3 = arith.constant 0 : i32
    %14 = vector.broadcast %c0_i32_3 : i32 to vector<1x256xi32>
    %15 = arith.cmpi ne, %13, %14 : vector<1x256xi32>
    %c0_i32_4 = arith.constant 0 : i32
    %16 = vector.broadcast %c0_i32_4 : i32 to vector<1x256xi32>
    %17 = arith.cmpi slt, %13, %16 : vector<1x256xi32>
    %c0_i32_5 = arith.constant 0 : i32
    %18 = arith.cmpi slt, %11, %c0_i32_5 : i32
    %19 = vector.broadcast %18 : i1 to vector<1x256xi1>
    %20 = vector.broadcast %19 : vector<1x256xi1> to vector<1x256xi1>
    %21 = arith.xori %17, %20 : vector<1x256xi1>
    %22 = arith.andi %21, %15 : vector<1x256xi1>
    %23 = vector.broadcast %11 : i32 to vector<1x256xi32>
    %24 = arith.addi %13, %23 : vector<1x256xi32>
    %25 = arith.select %22, %24, %13 : vector<1x256xi1>, vector<1x256xi32>
    %c14_i32 = arith.constant 14 : i32
    %26 = tpu.dynamic_rotate %8 by %c14_i32 dim 1 : vector<8x256xf32>, i32 -> vector<8x256xf32>
    %c-14_i32 = arith.constant -14 : i32
    %27 = vector.broadcast %c-14_i32 : i32 to vector<1x256xi32>
    %28 = arith.addi %25, %27 : vector<1x256xi32>
    %c0_i32_6 = arith.constant 0 : i32
    %29 = vector.broadcast %c0_i32_6 : i32 to vector<1x256xi32>
    %30 = arith.cmpi sge, %28, %29 : vector<1x256xi32>
    %c-14_i32_7 = arith.constant -14 : i32
    %31 = vector.broadcast %c-14_i32_7 : i32 to vector<1x256xi32>
    %32 = arith.addi %25, %31 : vector<1x256xi32>
    %c128_i32_8 = arith.constant 128 : i32
    %33 = vector.broadcast %c128_i32_8 : i32 to vector<1x256xi32>
    %34 = arith.cmpi slt, %32, %33 : vector<1x256xi32>
    %35 = arith.andi %30, %34 : vector<1x256xi1>
    %cst_9 = arith.constant 0.000000e+00 : f32
    %36 = vector.shape_cast %35 : vector<1x256xi1> to vector<1x256xi1>
    %37 = vector.broadcast %36 : vector<1x256xi1> to vector<8x256xi1>
    %38 = vector.broadcast %cst_9 : f32 to vector<8x256xf32>
    %39 = arith.select %37, %26, %38 : vector<8x256xi1>, vector<8x256xf32>
    %c12_i32 = arith.constant 12 : i32
    %40 = tpu.dynamic_rotate %8 by %c12_i32 dim 1 : vector<8x256xf32>, i32 -> vector<8x256xf32>
    %c-12_i32 = arith.constant -12 : i32
    %41 = vector.broadcast %c-12_i32 : i32 to vector<1x256xi32>
    %42 = arith.addi %25, %41 : vector<1x256xi32>
    %c0_i32_10 = arith.constant 0 : i32
    %43 = vector.broadcast %c0_i32_10 : i32 to vector<1x256xi32>
    %44 = arith.cmpi sge, %42, %43 : vector<1x256xi32>
    %c-12_i32_11 = arith.constant -12 : i32
    %45 = vector.broadcast %c-12_i32_11 : i32 to vector<1x256xi32>
    %46 = arith.addi %25, %45 : vector<1x256xi32>
    %c128_i32_12 = arith.constant 128 : i32
    %47 = vector.broadcast %c128_i32_12 : i32 to vector<1x256xi32>
    %48 = arith.cmpi slt, %46, %47 : vector<1x256xi32>
    %49 = arith.andi %44, %48 : vector<1x256xi1>
    %cst_13 = arith.constant 0.000000e+00 : f32
    %50 = vector.shape_cast %49 : vector<1x256xi1> to vector<1x256xi1>
    %51 = vector.broadcast %50 : vector<1x256xi1> to vector<8x256xi1>
    %52 = vector.broadcast %cst_13 : f32 to vector<8x256xf32>
    %53 = arith.select %51, %40, %52 : vector<8x256xi1>, vector<8x256xf32>
    %c10_i32 = arith.constant 10 : i32
    %54 = tpu.dynamic_rotate %8 by %c10_i32 dim 1 : vector<8x256xf32>, i32 -> vector<8x256xf32>
    %c-10_i32 = arith.constant -10 : i32
    %55 = vector.broadcast %c-10_i32 : i32 to vector<1x256xi32>
    %56 = arith.addi %25, %55 : vector<1x256xi32>
    %c0_i32_14 = arith.constant 0 : i32
    %57 = vector.broadcast %c0_i32_14 : i32 to vector<1x256xi32>
    %58 = arith.cmpi sge, %56, %57 : vector<1x256xi32>
    %c-10_i32_15 = arith.constant -10 : i32
    %59 = vector.broadcast %c-10_i32_15 : i32 to vector<1x256xi32>
    %60 = arith.addi %25, %59 : vector<1x256xi32>
    %c128_i32_16 = arith.constant 128 : i32
    %61 = vector.broadcast %c128_i32_16 : i32 to vector<1x256xi32>
    %62 = arith.cmpi slt, %60, %61 : vector<1x256xi32>
    %63 = arith.andi %58, %62 : vector<1x256xi1>
    %cst_17 = arith.constant 0.000000e+00 : f32
    %64 = vector.shape_cast %63 : vector<1x256xi1> to vector<1x256xi1>
    %65 = vector.broadcast %64 : vector<1x256xi1> to vector<8x256xi1>
    %66 = vector.broadcast %cst_17 : f32 to vector<8x256xf32>
    %67 = arith.select %65, %54, %66 : vector<8x256xi1>, vector<8x256xf32>
    %c8_i32 = arith.constant 8 : i32
    %68 = tpu.dynamic_rotate %8 by %c8_i32 dim 1 : vector<8x256xf32>, i32 -> vector<8x256xf32>
    %c-8_i32 = arith.constant -8 : i32
    %69 = vector.broadcast %c-8_i32 : i32 to vector<1x256xi32>
    %70 = arith.addi %25, %69 : vector<1x256xi32>
    %c0_i32_18 = arith.constant 0 : i32
    %71 = vector.broadcast %c0_i32_18 : i32 to vector<1x256xi32>
    %72 = arith.cmpi sge, %70, %71 : vector<1x256xi32>
    %c-8_i32_19 = arith.constant -8 : i32
    %73 = vector.broadcast %c-8_i32_19 : i32 to vector<1x256xi32>
    %74 = arith.addi %25, %73 : vector<1x256xi32>
    %c128_i32_20 = arith.constant 128 : i32
    %75 = vector.broadcast %c128_i32_20 : i32 to vector<1x256xi32>
    %76 = arith.cmpi slt, %74, %75 : vector<1x256xi32>
    %77 = arith.andi %72, %76 : vector<1x256xi1>
    %cst_21 = arith.constant 0.000000e+00 : f32
    %78 = vector.shape_cast %77 : vector<1x256xi1> to vector<1x256xi1>
    %79 = vector.broadcast %78 : vector<1x256xi1> to vector<8x256xi1>
    %80 = vector.broadcast %cst_21 : f32 to vector<8x256xf32>
    %81 = arith.select %79, %68, %80 : vector<8x256xi1>, vector<8x256xf32>
    %c6_i32 = arith.constant 6 : i32
    %82 = tpu.dynamic_rotate %8 by %c6_i32 dim 1 : vector<8x256xf32>, i32 -> vector<8x256xf32>
    %c-6_i32 = arith.constant -6 : i32
    %83 = vector.broadcast %c-6_i32 : i32 to vector<1x256xi32>
    %84 = arith.addi %25, %83 : vector<1x256xi32>
    %c0_i32_22 = arith.constant 0 : i32
    %85 = vector.broadcast %c0_i32_22 : i32 to vector<1x256xi32>
    %86 = arith.cmpi sge, %84, %85 : vector<1x256xi32>
    %c-6_i32_23 = arith.constant -6 : i32
    %87 = vector.broadcast %c-6_i32_23 : i32 to vector<1x256xi32>
    %88 = arith.addi %25, %87 : vector<1x256xi32>
    %c128_i32_24 = arith.constant 128 : i32
    %89 = vector.broadcast %c128_i32_24 : i32 to vector<1x256xi32>
    %90 = arith.cmpi slt, %88, %89 : vector<1x256xi32>
    %91 = arith.andi %86, %90 : vector<1x256xi1>
    %cst_25 = arith.constant 0.000000e+00 : f32
    %92 = vector.shape_cast %91 : vector<1x256xi1> to vector<1x256xi1>
    %93 = vector.broadcast %92 : vector<1x256xi1> to vector<8x256xi1>
    %94 = vector.broadcast %cst_25 : f32 to vector<8x256xf32>
    %95 = arith.select %93, %82, %94 : vector<8x256xi1>, vector<8x256xf32>
    %c4_i32 = arith.constant 4 : i32
    %96 = tpu.dynamic_rotate %8 by %c4_i32 dim 1 : vector<8x256xf32>, i32 -> vector<8x256xf32>
    %c-4_i32 = arith.constant -4 : i32
    %97 = vector.broadcast %c-4_i32 : i32 to vector<1x256xi32>
    %98 = arith.addi %25, %97 : vector<1x256xi32>
    %c0_i32_26 = arith.constant 0 : i32
    %99 = vector.broadcast %c0_i32_26 : i32 to vector<1x256xi32>
    %100 = arith.cmpi sge, %98, %99 : vector<1x256xi32>
    %c-4_i32_27 = arith.constant -4 : i32
    %101 = vector.broadcast %c-4_i32_27 : i32 to vector<1x256xi32>
    %102 = arith.addi %25, %101 : vector<1x256xi32>
    %c128_i32_28 = arith.constant 128 : i32
    %103 = vector.broadcast %c128_i32_28 : i32 to vector<1x256xi32>
    %104 = arith.cmpi slt, %102, %103 : vector<1x256xi32>
    %105 = arith.andi %100, %104 : vector<1x256xi1>
    %cst_29 = arith.constant 0.000000e+00 : f32
    %106 = vector.shape_cast %105 : vector<1x256xi1> to vector<1x256xi1>
    %107 = vector.broadcast %106 : vector<1x256xi1> to vector<8x256xi1>
    %108 = vector.broadcast %cst_29 : f32 to vector<8x256xf32>
    %109 = arith.select %107, %96, %108 : vector<8x256xi1>, vector<8x256xf32>
    %c2_i32 = arith.constant 2 : i32
    %110 = tpu.dynamic_rotate %8 by %c2_i32 dim 1 : vector<8x256xf32>, i32 -> vector<8x256xf32>
    %c-2_i32 = arith.constant -2 : i32
    %111 = vector.broadcast %c-2_i32 : i32 to vector<1x256xi32>
    %112 = arith.addi %25, %111 : vector<1x256xi32>
    %c0_i32_30 = arith.constant 0 : i32
    %113 = vector.broadcast %c0_i32_30 : i32 to vector<1x256xi32>
    %114 = arith.cmpi sge, %112, %113 : vector<1x256xi32>
    %c-2_i32_31 = arith.constant -2 : i32
    %115 = vector.broadcast %c-2_i32_31 : i32 to vector<1x256xi32>
    %116 = arith.addi %25, %115 : vector<1x256xi32>
    %c128_i32_32 = arith.constant 128 : i32
    %117 = vector.broadcast %c128_i32_32 : i32 to vector<1x256xi32>
    %118 = arith.cmpi slt, %116, %117 : vector<1x256xi32>
    %119 = arith.andi %114, %118 : vector<1x256xi1>
    %cst_33 = arith.constant 0.000000e+00 : f32
    %120 = vector.shape_cast %119 : vector<1x256xi1> to vector<1x256xi1>
    %121 = vector.broadcast %120 : vector<1x256xi1> to vector<8x256xi1>
    %122 = vector.broadcast %cst_33 : f32 to vector<8x256xf32>
    %123 = arith.select %121, %110, %122 : vector<8x256xi1>, vector<8x256xf32>
    %c254_i32 = arith.constant 254 : i32
    %124 = tpu.dynamic_rotate %8 by %c254_i32 dim 1 : vector<8x256xf32>, i32 -> vector<8x256xf32>
    %c2_i32_34 = arith.constant 2 : i32
    %125 = vector.broadcast %c2_i32_34 : i32 to vector<1x256xi32>
    %126 = arith.addi %25, %125 : vector<1x256xi32>
    %c0_i32_35 = arith.constant 0 : i32
    %127 = vector.broadcast %c0_i32_35 : i32 to vector<1x256xi32>
    %128 = arith.cmpi sge, %126, %127 : vector<1x256xi32>
    %c2_i32_36 = arith.constant 2 : i32
    %129 = vector.broadcast %c2_i32_36 : i32 to vector<1x256xi32>
    %130 = arith.addi %25, %129 : vector<1x256xi32>
    %c128_i32_37 = arith.constant 128 : i32
    %131 = vector.broadcast %c128_i32_37 : i32 to vector<1x256xi32>
    %132 = arith.cmpi slt, %130, %131 : vector<1x256xi32>
    %133 = arith.andi %128, %132 : vector<1x256xi1>
    %cst_38 = arith.constant 0.000000e+00 : f32
    %134 = vector.shape_cast %133 : vector<1x256xi1> to vector<1x256xi1>
    %135 = vector.broadcast %134 : vector<1x256xi1> to vector<8x256xi1>
    %136 = vector.broadcast %cst_38 : f32 to vector<8x256xf32>
    %137 = arith.select %135, %124, %136 : vector<8x256xi1>, vector<8x256xf32>
    %c252_i32 = arith.constant 252 : i32
    %138 = tpu.dynamic_rotate %8 by %c252_i32 dim 1 : vector<8x256xf32>, i32 -> vector<8x256xf32>
    %c4_i32_39 = arith.constant 4 : i32
    %139 = vector.broadcast %c4_i32_39 : i32 to vector<1x256xi32>
    %140 = arith.addi %25, %139 : vector<1x256xi32>
    %c0_i32_40 = arith.constant 0 : i32
    %141 = vector.broadcast %c0_i32_40 : i32 to vector<1x256xi32>
    %142 = arith.cmpi sge, %140, %141 : vector<1x256xi32>
    %c4_i32_41 = arith.constant 4 : i32
    %143 = vector.broadcast %c4_i32_41 : i32 to vector<1x256xi32>
    %144 = arith.addi %25, %143 : vector<1x256xi32>
    %c128_i32_42 = arith.constant 128 : i32
    %145 = vector.broadcast %c128_i32_42 : i32 to vector<1x256xi32>
    %146 = arith.cmpi slt, %144, %145 : vector<1x256xi32>
    %147 = arith.andi %142, %146 : vector<1x256xi1>
    %cst_43 = arith.constant 0.000000e+00 : f32
    %148 = vector.shape_cast %147 : vector<1x256xi1> to vector<1x256xi1>
    %149 = vector.broadcast %148 : vector<1x256xi1> to vector<8x256xi1>
    %150 = vector.broadcast %cst_43 : f32 to vector<8x256xf32>
    %151 = arith.select %149, %138, %150 : vector<8x256xi1>, vector<8x256xf32>
    %c250_i32 = arith.constant 250 : i32
    %152 = tpu.dynamic_rotate %8 by %c250_i32 dim 1 : vector<8x256xf32>, i32 -> vector<8x256xf32>
    %c6_i32_44 = arith.constant 6 : i32
    %153 = vector.broadcast %c6_i32_44 : i32 to vector<1x256xi32>
    %154 = arith.addi %25, %153 : vector<1x256xi32>
    %c0_i32_45 = arith.constant 0 : i32
    %155 = vector.broadcast %c0_i32_45 : i32 to vector<1x256xi32>
    %156 = arith.cmpi sge, %154, %155 : vector<1x256xi32>
    %c6_i32_46 = arith.constant 6 : i32
    %157 = vector.broadcast %c6_i32_46 : i32 to vector<1x256xi32>
    %158 = arith.addi %25, %157 : vector<1x256xi32>
    %c128_i32_47 = arith.constant 128 : i32
    %159 = vector.broadcast %c128_i32_47 : i32 to vector<1x256xi32>
    %160 = arith.cmpi slt, %158, %159 : vector<1x256xi32>
    %161 = arith.andi %156, %160 : vector<1x256xi1>
    %cst_48 = arith.constant 0.000000e+00 : f32
    %162 = vector.shape_cast %161 : vector<1x256xi1> to vector<1x256xi1>
    %163 = vector.broadcast %162 : vector<1x256xi1> to vector<8x256xi1>
    %164 = vector.broadcast %cst_48 : f32 to vector<8x256xf32>
    %165 = arith.select %163, %152, %164 : vector<8x256xi1>, vector<8x256xf32>
    %c248_i32 = arith.constant 248 : i32
    %166 = tpu.dynamic_rotate %8 by %c248_i32 dim 1 : vector<8x256xf32>, i32 -> vector<8x256xf32>
    %c8_i32_49 = arith.constant 8 : i32
    %167 = vector.broadcast %c8_i32_49 : i32 to vector<1x256xi32>
    %168 = arith.addi %25, %167 : vector<1x256xi32>
    %c0_i32_50 = arith.constant 0 : i32
    %169 = vector.broadcast %c0_i32_50 : i32 to vector<1x256xi32>
    %170 = arith.cmpi sge, %168, %169 : vector<1x256xi32>
    %c8_i32_51 = arith.constant 8 : i32
    %171 = vector.broadcast %c8_i32_51 : i32 to vector<1x256xi32>
    %172 = arith.addi %25, %171 : vector<1x256xi32>
    %c128_i32_52 = arith.constant 128 : i32
    %173 = vector.broadcast %c128_i32_52 : i32 to vector<1x256xi32>
    %174 = arith.cmpi slt, %172, %173 : vector<1x256xi32>
    %175 = arith.andi %170, %174 : vector<1x256xi1>
    %cst_53 = arith.constant 0.000000e+00 : f32
    %176 = vector.shape_cast %175 : vector<1x256xi1> to vector<1x256xi1>
    %177 = vector.broadcast %176 : vector<1x256xi1> to vector<8x256xi1>
    %178 = vector.broadcast %cst_53 : f32 to vector<8x256xf32>
    %179 = arith.select %177, %166, %178 : vector<8x256xi1>, vector<8x256xf32>
    %c246_i32 = arith.constant 246 : i32
    %180 = tpu.dynamic_rotate %8 by %c246_i32 dim 1 : vector<8x256xf32>, i32 -> vector<8x256xf32>
    %c10_i32_54 = arith.constant 10 : i32
    %181 = vector.broadcast %c10_i32_54 : i32 to vector<1x256xi32>
    %182 = arith.addi %25, %181 : vector<1x256xi32>
    %c0_i32_55 = arith.constant 0 : i32
    %183 = vector.broadcast %c0_i32_55 : i32 to vector<1x256xi32>
    %184 = arith.cmpi sge, %182, %183 : vector<1x256xi32>
    %c10_i32_56 = arith.constant 10 : i32
    %185 = vector.broadcast %c10_i32_56 : i32 to vector<1x256xi32>
    %186 = arith.addi %25, %185 : vector<1x256xi32>
    %c128_i32_57 = arith.constant 128 : i32
    %187 = vector.broadcast %c128_i32_57 : i32 to vector<1x256xi32>
    %188 = arith.cmpi slt, %186, %187 : vector<1x256xi32>
    %189 = arith.andi %184, %188 : vector<1x256xi1>
    %cst_58 = arith.constant 0.000000e+00 : f32
    %190 = vector.shape_cast %189 : vector<1x256xi1> to vector<1x256xi1>
    %191 = vector.broadcast %190 : vector<1x256xi1> to vector<8x256xi1>
    %192 = vector.broadcast %cst_58 : f32 to vector<8x256xf32>
    %193 = arith.select %191, %180, %192 : vector<8x256xi1>, vector<8x256xf32>
    %c244_i32 = arith.constant 244 : i32
    %194 = tpu.dynamic_rotate %8 by %c244_i32 dim 1 : vector<8x256xf32>, i32 -> vector<8x256xf32>
    %c12_i32_59 = arith.constant 12 : i32
    %195 = vector.broadcast %c12_i32_59 : i32 to vector<1x256xi32>
    %196 = arith.addi %25, %195 : vector<1x256xi32>
    %c0_i32_60 = arith.constant 0 : i32
    %197 = vector.broadcast %c0_i32_60 : i32 to vector<1x256xi32>
    %198 = arith.cmpi sge, %196, %197 : vector<1x256xi32>
    %c12_i32_61 = arith.constant 12 : i32
    %199 = vector.broadcast %c12_i32_61 : i32 to vector<1x256xi32>
    %200 = arith.addi %25, %199 : vector<1x256xi32>
    %c128_i32_62 = arith.constant 128 : i32
    %201 = vector.broadcast %c128_i32_62 : i32 to vector<1x256xi32>
    %202 = arith.cmpi slt, %200, %201 : vector<1x256xi32>
    %203 = arith.andi %198, %202 : vector<1x256xi1>
    %cst_63 = arith.constant 0.000000e+00 : f32
    %204 = vector.shape_cast %203 : vector<1x256xi1> to vector<1x256xi1>
    %205 = vector.broadcast %204 : vector<1x256xi1> to vector<8x256xi1>
    %206 = vector.broadcast %cst_63 : f32 to vector<8x256xf32>
    %207 = arith.select %205, %194, %206 : vector<8x256xi1>, vector<8x256xf32>
    %c242_i32 = arith.constant 242 : i32
    %208 = tpu.dynamic_rotate %8 by %c242_i32 dim 1 : vector<8x256xf32>, i32 -> vector<8x256xf32>
    %c14_i32_64 = arith.constant 14 : i32
    %209 = vector.broadcast %c14_i32_64 : i32 to vector<1x256xi32>
    %210 = arith.addi %25, %209 : vector<1x256xi32>
    %c0_i32_65 = arith.constant 0 : i32
    %211 = vector.broadcast %c0_i32_65 : i32 to vector<1x256xi32>
    %212 = arith.cmpi sge, %210, %211 : vector<1x256xi32>
    %c14_i32_66 = arith.constant 14 : i32
    %213 = vector.broadcast %c14_i32_66 : i32 to vector<1x256xi32>
    %214 = arith.addi %25, %213 : vector<1x256xi32>
    %c128_i32_67 = arith.constant 128 : i32
    %215 = vector.broadcast %c128_i32_67 : i32 to vector<1x256xi32>
    %216 = arith.cmpi slt, %214, %215 : vector<1x256xi32>
    %217 = arith.andi %212, %216 : vector<1x256xi1>
    %cst_68 = arith.constant 0.000000e+00 : f32
    %218 = vector.shape_cast %217 : vector<1x256xi1> to vector<1x256xi1>
    %219 = vector.broadcast %218 : vector<1x256xi1> to vector<8x256xi1>
    %220 = vector.broadcast %cst_68 : f32 to vector<8x256xf32>
    %221 = arith.select %219, %208, %220 : vector<8x256xi1>, vector<8x256xf32>
    %222 = tpu.concatenate %39, %53, %67, %81, %95, %109, %123, %8, %137, %151, %165, %179, %193, %207, %221, %1 in 0 : vector<8x256xf32>, vector<8x256xf32>, vector<8x256xf32>, vector<8x256xf32>, vector<8x256xf32>, vector<8x256xf32>, vector<8x256xf32>, vector<8x256xf32>, vector<8x256xf32>, vector<8x256xf32>, vector<8x256xf32>, vector<8x256xf32>, vector<8x256xf32>, vector<8x256xf32>, vector<8x256xf32>, vector<8x256xf32> -> vector<128x256xf32>
    %cst_69 = arith.constant dense<0.000000e+00> : vector<8x256xf32>
    %223 = tpu.matmul %5, %222, %cst_69 {dimension_numbers = #tpu.dot_dimension_numbers<[1], [0], [0], [1], [0, 0, 1, 1], [], []>} : vector<8x128xf32>, vector<128x256xf32>, vector<8x256xf32> -> vector<8x256xf32>
    %cst_70 = arith.constant 0.000000e+00 : f32
    %224 = vector.broadcast %cst_70 : f32 to vector<8x256xf32>
    %225 = arith.maximumf %223, %224 : vector<8x256xf32>
    %226 = arith.addf %225, %2 : vector<8x256xf32>
    %cst_71 = arith.constant dense<0.000000e+00> : vector<8xf32>
    %227 = vector.multi_reduction <add>, %226, %cst_71 [1] : vector<8x256xf32> to vector<8xf32>
    %228 = vector.shape_cast %227 : vector<8xf32> to vector<8x1xf32>
    %cst_72 = arith.constant 3.906250e-03 : f32
    %229 = vector.broadcast %cst_72 : f32 to vector<8x1xf32>
    %230 = arith.mulf %228, %229 : vector<8x1xf32>
    %231 = arith.mulf %226, %226 : vector<8x256xf32>
    %cst_73 = arith.constant dense<0.000000e+00> : vector<8xf32>
    %232 = vector.multi_reduction <add>, %231, %cst_73 [1] : vector<8x256xf32> to vector<8xf32>
    %233 = vector.shape_cast %232 : vector<8xf32> to vector<8x1xf32>
    %cst_74 = arith.constant 3.906250e-03 : f32
    %234 = vector.broadcast %cst_74 : f32 to vector<8x1xf32>
    %235 = arith.mulf %233, %234 : vector<8x1xf32>
    %236 = arith.mulf %230, %230 : vector<8x1xf32>
    %237 = arith.subf %235, %236 : vector<8x1xf32>
    %cst_75 = arith.constant 0.000000e+00 : f32
    %238 = vector.broadcast %cst_75 : f32 to vector<8x1xf32>
    %239 = arith.maximumf %237, %238 : vector<8x1xf32>
    %cst_76 = arith.constant 9.99999974E-6 : f32
    %240 = vector.broadcast %cst_76 : f32 to vector<8x1xf32>
    %241 = arith.addf %239, %240 : vector<8x1xf32>
    %242 = math.rsqrt %241 : vector<8x1xf32>
    %243 = arith.mulf %6, %242 : vector<8x1xf32>
    %244 = arith.mulf %230, %243 : vector<8x1xf32>
    %245 = arith.subf %7, %244 : vector<8x1xf32>
    %246 = vector.broadcast %243 : vector<8x1xf32> to vector<8x256xf32>
    %247 = arith.mulf %226, %246 : vector<8x256xf32>
    %248 = vector.broadcast %245 : vector<8x1xf32> to vector<8x256xf32>
    %249 = arith.addf %247, %248 : vector<8x256xf32>
    %c0_77 = arith.constant 0 : index
    %c0_78 = arith.constant 0 : index
    %250 = vector.load %arg2[%c0_77, %c0_78] : memref<8x256xf32, #tpu.memory_space<vmem>>, vector<8x256xf32>
    tpu.vector_store %arg2[%c0_77, %c0_78], %249 {strides = array<i32>} : memref<8x256xf32, #tpu.memory_space<vmem>>, vector<8x256xf32>,
    return
  }
}

</mosaic_0001>

<llo_original>
// kernel: forward_impl.1
$region0: #{forward_impl.1}
  #allocation0 [shape = 'u32[]', space=smem, size = 0x4, offset = 0x4, fixed_abs, tag = 'smem constant byte address 0x4 - core index']
  #allocation1 [shape = 'u32[144,128]{1,0:T(1,128)}', space=vmem, size = 0x12000, scoped, tag = 'internal scratch']
  %s0 = inlined_call_operand.vmem [shape: f32[16,256], index: 0, kind: input, shape index: {}]
  %s1 = inlined_call_operand.vmem [shape: f32[8,258], index: 1, kind: input, shape index: {}]
  %s2 = inlined_call_operand.hbm [shape: f32[8,256], index: 2, kind: output, shape index: {}]
  %s3 = sld [smem:[#allocation0]]
  $region18: #{forward_impl.1} parent=0
    _
  %s5 = ssub.s32 1, %s3
  %s6 = scalar_select 0, %s5, %s3
  $region1: #{forward_impl.1} parent=0
    #allocation2 [shape = 'u8[8192]{0}', space=vmem, size = 0x2000, scoped, tag = 'output window, operand 0, single buffered']
    #allocation3 [shape = 's32[1]{0}', space=sflag, size = 0x4, scoped, tag = 'scoped memory for forward_impl.1']
    %7 = vsyncpa [#allocation3], 0
    // Predicated region
    $region2: #{forward_impl.1} parent=1 // pred_check
      _
    $region3: #{forward_impl.1} parent=1 // pred_check_branch
      %9 = sbr.rel (0) target = $region5
    $region4: #{forward_impl.1} parent=1 // pred_region
      _
    $region5: #{forward_impl.1} parent=1 // pred_fallthru
      _
    // Predicated region
    $region6: #{forward_impl.1} parent=1 // pred_check
      _
    $region7: #{forward_impl.1} parent=1 // pred_check_branch
      %11 = sbr.rel (0) target = $region9
    $region8: #{forward_impl.1} parent=1 // pred_region
      _
    $region9: #{forward_impl.1} parent=1 // pred_fallthru
      _
    %v12 = vld [vmem:[%s0] sm:$0xff]
    %v13 = vld [vmem:[%s0 + $0x8] sm:$0xff]
    %v14 = vld [vmem:[%s0 + $0x10] sm:$0xff]
    %v15 = vld [vmem:[%s0 + $0x18] sm:$0xff]
    %v16 = vld [vmem:[%s1] sm:$0xff]
    %v17 = vld [vmem:[%s1 + $0x8] sm:$0xff]
    %v18 = vld [vmem:[%s1 + $0x10] sm:$0xff]
    %vm19 = vcmask 130048
    %v21 = vsel %vm19, %v16, 0
    %23 = vmatprep.subr.mxu0 %v13
    %24 = vmatpush1.msra.mxu0 %v12
    %25 = vmatprep.subr.mxu0 %v15
    %26 = vmatpush1.msra.mxu0 %v14
    %27 = vmatprep.subr.mxu0 0.0
    %28 = vmatpush1.msra.mxu0 0.0
    %29 = vmatprep.subr.mxu0 0.0
    %30 = vmatpush1.msra.mxu0 0.0
    %31 = vmatprep.subr.mxu0 0.0
    %32 = vmatpush1.msra.mxu0 0.0
    %33 = vmatprep.subr.mxu0 0.0
    %34 = vmatpush1.msra.mxu0 0.0
    %35 = vmatprep.subr.mxu0 0.0
    %36 = vmatpush1.msra.mxu0 0.0
    %37 = vmatprep.subr.mxu0 0.0
    %38 = vmatpush1.msra.mxu0 0.0
    %39 = vmatprep.subr.mxu0 0.0
    %40 = vmatpush1.msra.mxu0 0.0
    %41 = vmatprep.subr.mxu0 0.0
    %42 = vmatpush1.msra.mxu0 0.0
    %43 = vmatprep.subr.mxu0 0.0
    %44 = vmatpush1.msra.mxu0 0.0
    %45 = vmatprep.subr.mxu0 0.0
    %46 = vmatpush1.msra.mxu0 0.0
    %47 = vmatprep.subr.mxu0 0.0
    %48 = vmatpush1.msra.mxu0 0.0
    %49 = vmatprep.subr.mxu0 0.0
    %50 = vmatpush1.msra.mxu0 0.0
    %51 = vmatprep.subr.mxu0 0.0
    %52 = vmatpush1.msra.mxu0 0.0
    %53 = vmatprep.subr.mxu0 0.0
    %54 = vmatpush1.msra.mxu0 0.0
    %55 = vmatprep.subr.mxu0 0.0
    %56 = vmatpush1.msra.mxu0 0.0
    %57 = vmatprep.subr.mxu0 0.0
    %58 = vmatpush1.msra.mxu0 0.0
    %59 = vmatprep.subr.mxu0 0.0
    %60 = vmatpush1.msra.mxu0 0.0
    %61 = vmatprep.subr.mxu0 0.0
    %62 = vmatpush1.msra.mxu0 0.0
    %63 = vmatprep.subr.mxu0 0.0
    %64 = vmatpush1.msra.mxu0 0.0
    %65 = vmatprep.subr.mxu0 0.0
    %66 = vmatpush1.msra.mxu0 0.0
    %67 = vmatprep.subr.mxu0 0.0
    %68 = vmatpush1.msra.mxu0 0.0
    %69 = vmatprep.subr.mxu0 0.0
    %70 = vmatpush1.msra.mxu0 0.0
    %71 = vmatprep.subr.mxu0 0.0
    %72 = vmatpush1.msra.mxu0 0.0
    %73 = vmatprep.subr.mxu0 0.0
    %74 = vmatpush1.msra.mxu0 0.0
    %75 = vmatprep.subr.mxu0 0.0
    %76 = vmatpush1.msra.mxu0 0.0
    %77 = vmatprep.subr.mxu0 0.0
    %78 = vmatpush1.msra.mxu0 0.0
    %79 = vmatprep.subr.mxu0 0.0
    %80 = vmatpush1.msra.mxu0 0.0
    %81 = vmatprep.subr.mxu0 0.0
    %82 = vmatpush1.msra.mxu0 0.0
    %83 = vmatprep.subr.mxu0 0.0
    %84 = vmatpush1.msra.mxu0 0.0
    %85 = vmatprep.subr.mxu0 0.0
    %86 = vmatpush1.msra.mxu0 0.0
    %87 = vmatprep.mubr.f32.mxu0 0.0
    %88 = vmatmul.mubr.f32.gmra.mrb[0].mxu0 %v21
    %v89 = vpop.f32.mrb[0].mxu0
    %v90 = vadd.f32 0.0, %v89
    %v91 = vpop.f32.mrb[0].mxu0
    %v92 = vadd.f32 0.0, %v91
    %93 = vdwg.mxu0
    %v94 = vlaneseq
    %v95 = vand.u32 %v94, 127
    %v96 = vadd.s32 %v95, 128
    %vm97 = vcmp.lt.s32.totalorder %v95, 0
    %v98 = vsub.s32 0, %v95
    %v99 = vsel %vm97, %v98, %v95
    %v100 = vshrl.u32 %v99, 7
    %v101 = vand.u32 %v99, 127
    %v102 = vsub.s32 0, %v101
    %v103 = vsel %vm97, %v102, %v101
    %vm104 = vcmp.lt.s32.totalorder %v96, 0
    %v105 = vsub.s32 0, %v96
    %v106 = vsel %vm104, %v105, %v96
    %v107 = vshrl.u32 %v106, 7
    %v108 = vand.u32 %v106, 127
    %v109 = vsub.s32 0, %v108
    %v110 = vsel %vm104, %v109, %v108
    %vm111 = vcmp.ne.s32.totalorder %v103, 0
    %vm112 = vcmp.ne.s32.totalorder %v110, 0
    %vm113 = vcmp.lt.s32.totalorder %v103, 0
    %vm114 = vcmp.lt.s32.totalorder %v110, 0
    %vm115 = vmand %vm113, %vm111
    %vm116 = vmand %vm114, %vm112
    %v117 = vadd.s32 %v103, 128
    %v118 = vadd.s32 %v110, 128
    %v119 = vsel %vm115, %v117, %v103
    %v120 = vsel %vm116, %v118, %v110
    %121 = vrot.lane.b32.xlu0 %v90, 14
    %v122 = vpop.permute.xlu0 %121
    %123 = vrot.lane.b32.xlu0 %v92, 14
    %v124 = vpop.permute.xlu0 %123
    %vm125 = vcmp.lt.s32.totalorder %v95, 14
    %v126 = vsel %vm125, %v122, %v124
    %v127 = vsel %vm125, %v124, %v122
    %v128 = vadd.s32 %v119, 4294967282
    %v129 = vadd.s32 %v120, 4294967282
    %vm130 = vcmp.ge.s32.totalorder %v128, 0
    %vm131 = vcmp.ge.s32.totalorder %v129, 0
    %vm132 = vcmp.lt.s32.totalorder %v128, 128
    %vm133 = vcmp.lt.s32.totalorder %v129, 128
    %vm134 = vmand %vm130, %vm132
    %vm135 = vmand %vm131, %vm133
    %v136 = vsel %vm134, 1, 0
    %v137 = vsel %vm135, 1, 0
    %vm138 = vcmp.eq.s32.totalorder %v136, 1
    %vm139 = vcmp.eq.s32.totalorder %v137, 1
    %v140 = vsel %vm138, %v127, 0.0
    %v141 = vsel %vm139, %v126, 0.0
    %142 = vrot.lane.b32.xlu0 %v90, 12
    %v143 = vpop.permute.xlu0 %142
    %144 = vrot.lane.b32.xlu0 %v92, 12
    %v145 = vpop.permute.xlu0 %144
    %vm146 = vcmp.lt.s32.totalorder %v95, 12
    %v147 = vsel %vm146, %v143, %v145
    %v148 = vsel %vm146, %v145, %v143
    %v149 = vadd.s32 %v119, 4294967284
    %v150 = vadd.s32 %v120, 4294967284
    %vm151 = vcmp.ge.s32.totalorder %v149, 0
    %vm152 = vcmp.ge.s32.totalorder %v150, 0
    %vm153 = vcmp.lt.s32.totalorder %v149, 128
    %vm154 = vcmp.lt.s32.totalorder %v150, 128
    %vm155 = vmand %vm151, %vm153
    %vm156 = vmand %vm152, %vm154
    %v157 = vsel %vm155, 1, 0
    %v158 = vsel %vm156, 1, 0
    %vm159 = vcmp.eq.s32.totalorder %v157, 1
    %vm160 = vcmp.eq.s32.totalorder %v158, 1
    %v161 = vsel %vm159, %v148, 0.0
    %v162 = vsel %vm160, %v147, 0.0
    %163 = vrot.lane.b32.xlu0 %v90, 10
    %v164 = vpop.permute.xlu0 %163
    %165 = vrot.lane.b32.xlu0 %v92, 10
    %v166 = vpop.permute.xlu0 %165
    %vm167 = vcmp.lt.s32.totalorder %v95, 10
    %v168 = vsel %vm167, %v164, %v166
    %v169 = vsel %vm167, %v166, %v164
    %v170 = vadd.s32 %v119, 4294967286
    %v171 = vadd.s32 %v120, 4294967286
    %vm172 = vcmp.ge.s32.totalorder %v170, 0
    %vm173 = vcmp.ge.s32.totalorder %v171, 0
    %vm174 = vcmp.lt.s32.totalorder %v170, 128
    %vm175 = vcmp.lt.s32.totalorder %v171, 128
    %vm176 = vmand %vm172, %vm174
    %vm177 = vmand %vm173, %vm175
    %v178 = vsel %vm176, 1, 0
    %v179 = vsel %vm177, 1, 0
    %vm180 = vcmp.eq.s32.totalorder %v178, 1
    %vm181 = vcmp.eq.s32.totalorder %v179, 1
    %v182 = vsel %vm180, %v169, 0.0
    %v183 = vsel %vm181, %v168, 0.0
    %184 = vrot.lane.b32.xlu0 %v90, 8
    %v185 = vpop.permute.xlu0 %184
    %186 = vrot.lane.b32.xlu0 %v92, 8
    %v187 = vpop.permute.xlu0 %186
    %vm188 = vcmp.lt.s32.totalorder %v95, 8
    %v189 = vsel %vm188, %v185, %v187
    %v190 = vsel %vm188, %v187, %v185
    %v191 = vadd.s32 %v119, 4294967288
    %v192 = vadd.s32 %v120, 4294967288
    %vm193 = vcmp.ge.s32.totalorder %v191, 0
    %vm194 = vcmp.ge.s32.totalorder %v192, 0
    %vm195 = vcmp.lt.s32.totalorder %v191, 128
    %vm196 = vcmp.lt.s32.totalorder %v192, 128
    %vm197 = vmand %vm193, %vm195
    %vm198 = vmand %vm194, %vm196
    %v199 = vsel %vm197, 1, 0
    %v200 = vsel %vm198, 1, 0
    %vm201 = vcmp.eq.s32.totalorder %v199, 1
    %vm202 = vcmp.eq.s32.totalorder %v200, 1
    %v203 = vsel %vm201, %v190, 0.0
    %v204 = vsel %vm202, %v189, 0.0
    %205 = vrot.lane.b32.xlu0 %v90, 6
    %v206 = vpop.permute.xlu0 %205
    %207 = vrot.lane.b32.xlu0 %v92, 6
    %v208 = vpop.permute.xlu0 %207
    %vm209 = vcmp.lt.s32.totalorder %v95, 6
    %v210 = vsel %vm209, %v206, %v208
    %v211 = vsel %vm209, %v208, %v206
    %v212 = vadd.s32 %v119, 4294967290
    %v213 = vadd.s32 %v120, 4294967290
    %vm214 = vcmp.ge.s32.totalorder %v212, 0
    %vm215 = vcmp.ge.s32.totalorder %v213, 0
    %vm216 = vcmp.lt.s32.totalorder %v212, 128
    %vm217 = vcmp.lt.s32.totalorder %v213, 128
    %vm218 = vmand %vm214, %vm216
    %vm219 = vmand %vm215, %vm217
    %v220 = vsel %vm218, 1, 0
    %v221 = vsel %vm219, 1, 0
    %vm222 = vcmp.eq.s32.totalorder %v220, 1
    %vm223 = vcmp.eq.s32.totalorder %v221, 1
    %v224 = vsel %vm222, %v211, 0.0
    %v225 = vsel %vm223, %v210, 0.0
    %226 = vrot.lane.b32.xlu0 %v90, 4
    %v227 = vpop.permute.xlu0 %226
    %228 = vrot.lane.b32.xlu0 %v92, 4
    %v229 = vpop.permute.xlu0 %228
    %vm230 = vcmp.lt.s32.totalorder %v95, 4
    %v231 = vsel %vm230, %v227, %v229
    %v232 = vsel %vm230, %v229, %v227
    %v233 = vadd.s32 %v119, 4294967292
    %v234 = vadd.s32 %v120, 4294967292
    %vm235 = vcmp.ge.s32.totalorder %v233, 0
    %vm236 = vcmp.ge.s32.totalorder %v234, 0
    %vm237 = vcmp.lt.s32.totalorder %v233, 128
    %vm238 = vcmp.lt.s32.totalorder %v234, 128
    %vm239 = vmand %vm235, %vm237
    %vm240 = vmand %vm236, %vm238
    %v241 = vsel %vm239, 1, 0
    %v242 = vsel %vm240, 1, 0
    %vm243 = vcmp.eq.s32.totalorder %v241, 1
    %vm244 = vcmp.eq.s32.totalorder %v242, 1
    %v245 = vsel %vm243, %v232, 0.0
    %v246 = vsel %vm244, %v231, 0.0
    %247 = vrot.lane.b32.xlu0 %v90, 2
    %v248 = vpop.permute.xlu0 %247
    %249 = vrot.lane.b32.xlu0 %v92, 2
    %v250 = vpop.permute.xlu0 %249
    %vm251 = vcmp.lt.s32.totalorder %v95, 2
    %v252 = vsel %vm251, %v248, %v250
    %v253 = vsel %vm251, %v250, %v248
    %v254 = vadd.s32 %v119, 4294967294
    %v255 = vadd.s32 %v120, 4294967294
    %vm256 = vcmp.ge.s32.totalorder %v254, 0
    %vm257 = vcmp.ge.s32.totalorder %v255, 0
    %vm258 = vcmp.lt.s32.totalorder %v254, 128
    %vm259 = vcmp.lt.s32.totalorder %v255, 128
    %vm260 = vmand %vm256, %vm258
    %vm261 = vmand %vm257, %vm259
    %v262 = vsel %vm260, 1, 0
    %v263 = vsel %vm261, 1, 0
    %vm264 = vcmp.eq.s32.totalorder %v262, 1
    %vm265 = vcmp.eq.s32.totalorder %v263, 1
    %v266 = vsel %vm264, %v253, 0.0
    %v267 = vsel %vm265, %v252, 0.0
    %268 = vrot.lane.b32.xlu0 %v90, 126
    %v269 = vpop.permute.xlu0 %268
    %270 = vrot.lane.b32.xlu0 %v92, 126
    %v271 = vpop.permute.xlu0 %270
    %vm272 = vcmp.lt.s32.totalorder %v95, 126
    %v273 = vsel %vm272, %v269, %v271
    %v274 = vsel %vm272, %v271, %v269
    %v275 = vadd.s32 %v119, 2
    %v276 = vadd.s32 %v120, 2
    %vm277 = vcmp.ge.s32.totalorder %v275, 0
    %vm278 = vcmp.ge.s32.totalorder %v276, 0
    %vm279 = vcmp.lt.s32.totalorder %v275, 128
    %vm280 = vcmp.lt.s32.totalorder %v276, 128
    %vm281 = vmand %vm277, %vm279
    %vm282 = vmand %vm278, %vm280
    %v283 = vsel %vm281, 1, 0
    %v284 = vsel %vm282, 1, 0
    %vm285 = vcmp.eq.s32.totalorder %v283, 1
    %vm286 = vcmp.eq.s32.totalorder %v284, 1
    %v287 = vsel %vm285, %v273, 0.0
    %v288 = vsel %vm286, %v274, 0.0
    %289 = vrot.lane.b32.xlu0 %v90, 124
    %v290 = vpop.permute.xlu0 %289
    %291 = vrot.lane.b32.xlu0 %v92, 124
    %v292 = vpop.permute.xlu0 %291
    %vm293 = vcmp.lt.s32.totalorder %v95, 124
    %v294 = vsel %vm293, %v290, %v292
    %v295 = vsel %vm293, %v292, %v290
    %v296 = vadd.s32 %v119, 4
    %v297 = vadd.s32 %v120, 4
    %vm298 = vcmp.ge.s32.totalorder %v296, 0
    %vm299 = vcmp.ge.s32.totalorder %v297, 0
    %vm300 = vcmp.lt.s32.totalorder %v296, 128
    %vm301 = vcmp.lt.s32.totalorder %v297, 128
    %vm302 = vmand %vm298, %vm300
    %vm303 = vmand %vm299, %vm301
    %v304 = vsel %vm302, 1, 0
    %v305 = vsel %vm303, 1, 0
    %vm306 = vcmp.eq.s32.totalorder %v304, 1
    %vm307 = vcmp.eq.s32.totalorder %v305, 1
    %v308 = vsel %vm306, %v294, 0.0
    %v309 = vsel %vm307, %v295, 0.0
    %310 = vrot.lane.b32.xlu0 %v90, 122
    %v311 = vpop.permute.xlu0 %310
    %312 = vrot.lane.b32.xlu0 %v92, 122
    %v313 = vpop.permute.xlu0 %312
    %vm314 = vcmp.lt.s32.totalorder %v95, 122
    %v315 = vsel %vm314, %v311, %v313
    %v316 = vsel %vm314, %v313, %v311
    %v317 = vadd.s32 %v119, 6
    %v318 = vadd.s32 %v120, 6
    %vm319 = vcmp.ge.s32.totalorder %v317, 0
    %vm320 = vcmp.ge.s32.totalorder %v318, 0
    %vm321 = vcmp.lt.s32.totalorder %v317, 128
    %vm322 = vcmp.lt.s32.totalorder %v318, 128
    %vm323 = vmand %vm319, %vm321
    %vm324 = vmand %vm320, %vm322
    %v325 = vsel %vm323, 1, 0
    %v326 = vsel %vm324, 1, 0
    %vm327 = vcmp.eq.s32.totalorder %v325, 1
    %vm328 = vcmp.eq.s32.totalorder %v326, 1
    %v329 = vsel %vm327, %v315, 0.0
    %v330 = vsel %vm328, %v316, 0.0
    %331 = vrot.lane.b32.xlu0 %v90, 120
    %v332 = vpop.permute.xlu0 %331
    %333 = vrot.lane.b32.xlu0 %v92, 120
    %v334 = vpop.permute.xlu0 %333
    %vm335 = vcmp.lt.s32.totalorder %v95, 120
    %v336 = vsel %vm335, %v332, %v334
    %v337 = vsel %vm335, %v334, %v332
    %v338 = vadd.s32 %v119, 8
    %v339 = vadd.s32 %v120, 8
    %vm340 = vcmp.ge.s32.totalorder %v338, 0
    %vm341 = vcmp.ge.s32.totalorder %v339, 0
    %vm342 = vcmp.lt.s32.totalorder %v338, 128
    %vm343 = vcmp.lt.s32.totalorder %v339, 128
    %vm344 = vmand %vm340, %vm342
    %vm345 = vmand %vm341, %vm343
    %v346 = vsel %vm344, 1, 0
    %v347 = vsel %vm345, 1, 0
    %vm348 = vcmp.eq.s32.totalorder %v346, 1
    %vm349 = vcmp.eq.s32.totalorder %v347, 1
    %v350 = vsel %vm348, %v336, 0.0
    %v351 = vsel %vm349, %v337, 0.0
    %352 = vrot.lane.b32.xlu0 %v90, 118
    %v353 = vpop.permute.xlu0 %352
    %354 = vrot.lane.b32.xlu0 %v92, 118
    %v355 = vpop.permute.xlu0 %354
    %vm356 = vcmp.lt.s32.totalorder %v95, 118
    %v357 = vsel %vm356, %v353, %v355
    %v358 = vsel %vm356, %v355, %v353
    %v359 = vadd.s32 %v119, 10
    %v360 = vadd.s32 %v120, 10
    %vm361 = vcmp.ge.s32.totalorder %v359, 0
    %vm362 = vcmp.ge.s32.totalorder %v360, 0
    %vm363 = vcmp.lt.s32.totalorder %v359, 128
    %vm364 = vcmp.lt.s32.totalorder %v360, 128
    %vm365 = vmand %vm361, %vm363
    %vm366 = vmand %vm362, %vm364
    %v367 = vsel %vm365, 1, 0
    %v368 = vsel %vm366, 1, 0
    %vm369 = vcmp.eq.s32.totalorder %v367, 1
    %vm370 = vcmp.eq.s32.totalorder %v368, 1
    %v371 = vsel %vm369, %v357, 0.0
    %v372 = vsel %vm370, %v358, 0.0
    %373 = vrot.lane.b32.xlu0 %v90, 116
    %v374 = vpop.permute.xlu0 %373
    %375 = vrot.lane.b32.xlu0 %v92, 116
    %v376 = vpop.permute.xlu0 %375
    %vm377 = vcmp.lt.s32.totalorder %v95, 116
    %v378 = vsel %vm377, %v374, %v376
    %v379 = vsel %vm377, %v376, %v374
    %v380 = vadd.s32 %v119, 12
    %v381 = vadd.s32 %v120, 12
    %vm382 = vcmp.ge.s32.totalorder %v380, 0
    %vm383 = vcmp.ge.s32.totalorder %v381, 0
    %vm384 = vcmp.lt.s32.totalorder %v380, 128
    %vm385 = vcmp.lt.s32.totalorder %v381, 128
    %vm386 = vmand %vm382, %vm384
    %vm387 = vmand %vm383, %vm385
    %v388 = vsel %vm386, 1, 0
    %v389 = vsel %vm387, 1, 0
    %vm390 = vcmp.eq.s32.totalorder %v388, 1
    %vm391 = vcmp.eq.s32.totalorder %v389, 1
    %v392 = vsel %vm390, %v378, 0.0
    %v393 = vsel %vm391, %v379, 0.0
    %394 = vrot.lane.b32.xlu0 %v90, 114
    %v395 = vpop.permute.xlu0 %394
    %396 = vrot.lane.b32.xlu0 %v92, 114
    %v397 = vpop.permute.xlu0 %396
    %vm398 = vcmp.lt.s32.totalorder %v95, 114
    %v399 = vsel %vm398, %v395, %v397
    %v400 = vsel %vm398, %v397, %v395
    %v401 = vadd.s32 %v119, 14
    %v402 = vadd.s32 %v120, 14
    %vm403 = vcmp.ge.s32.totalorder %v401, 0
    %vm404 = vcmp.ge.s32.totalorder %v402, 0
    %vm405 = vcmp.lt.s32.totalorder %v401, 128
    %vm406 = vcmp.lt.s32.totalorder %v402, 128
    %vm407 = vmand %vm403, %vm405
    %vm408 = vmand %vm404, %vm406
    %v409 = vsel %vm407, 1, 0
    %v410 = vsel %vm408, 1, 0
    %vm411 = vcmp.eq.s32.totalorder %v409, 1
    %vm412 = vcmp.eq.s32.totalorder %v410, 1
    %v413 = vsel %vm411, %v399, 0.0
    %v414 = vsel %vm412, %v400, 0.0
    %415 = vmatprep.subr.mxu0 %v141
    %416 = vmatpush1.msra.mxu0 %v140
    %417 = vmatprep.subr.mxu0 %v162
    %418 = vmatpush1.msra.mxu0 %v161
    %419 = vmatprep.subr.mxu0 %v183
    %420 = vmatpush1.msra.mxu0 %v182
    %421 = vmatprep.subr.mxu0 %v204
    %422 = vmatpush1.msra.mxu0 %v203
    %423 = vmatprep.subr.mxu0 %v225
    %424 = vmatpush1.msra.mxu0 %v224
    %425 = vmatprep.subr.mxu0 %v246
    %426 = vmatpush1.msra.mxu0 %v245
    %427 = vmatprep.subr.mxu0 %v267
    %428 = vmatpush1.msra.mxu0 %v266
    %429 = vmatprep.subr.mxu0 %v92
    %430 = vmatpush1.msra.mxu0 %v90
    %431 = vmatprep.subr.mxu0 %v288
    %432 = vmatpush1.msra.mxu0 %v287
    %433 = vmatprep.subr.mxu0 %v309
    %434 = vmatpush1.msra.mxu0 %v308
    %435 = vmatprep.subr.mxu0 %v330
    %436 = vmatpush1.msra.mxu0 %v329
    %437 = vmatprep.subr.mxu0 %v351
    %438 = vmatpush1.msra.mxu0 %v350
    %439 = vmatprep.subr.mxu0 %v372
    %440 = vmatpush1.msra.mxu0 %v371
    %441 = vmatprep.subr.mxu0 %v393
    %442 = vmatpush1.msra.mxu0 %v392
    %443 = vmatprep.subr.mxu0 %v414
    %444 = vmatpush1.msra.mxu0 %v413
    %445 = vmatprep.subr.mxu0 %v13
    %446 = vmatpush1.msra.mxu0 %v12
    %447 = vmatprep.subr.mxu0 0.0
    %448 = vmatpush1.msra.mxu0 0.0
    %449 = vmatprep.subr.mxu0 0.0
    %450 = vmatpush1.msra.mxu0 0.0
    %451 = vmatprep.subr.mxu0 0.0
    %452 = vmatpush1.msra.mxu0 0.0
    %453 = vmatprep.subr.mxu0 0.0
    %454 = vmatpush1.msra.mxu0 0.0
    %455 = vmatprep.subr.mxu0 0.0
    %456 = vmatpush1.msra.mxu0 0.0
    %457 = vmatprep.subr.mxu0 0.0
    %458 = vmatpush1.msra.mxu0 0.0
    %459 = vmatprep.subr.mxu0 0.0
    %460 = vmatpush1.msra.mxu0 0.0
    %461 = vmatprep.subr.mxu0 0.0
    %462 = vmatpush1.msra.mxu0 0.0
    %463 = vmatprep.subr.mxu0 0.0
    %464 = vmatpush1.msra.mxu0 0.0
    %465 = vmatprep.subr.mxu0 0.0
    %466 = vmatpush1.msra.mxu0 0.0
    %467 = vmatprep.subr.mxu0 0.0
    %468 = vmatpush1.msra.mxu0 0.0
    %469 = vmatprep.subr.mxu0 0.0
    %470 = vmatpush1.msra.mxu0 0.0
    %471 = vmatprep.subr.mxu0 0.0
    %472 = vmatpush1.msra.mxu0 0.0
    %473 = vmatprep.subr.mxu0 0.0
    %474 = vmatpush1.msra.mxu0 0.0
    %475 = vmatprep.subr.mxu0 0.0
    %476 = vmatpush1.msra.mxu0 0.0
    %477 = vmatprep.subr.mxu0 0.0
    %478 = vmatpush1.msra.mxu0 0.0
    %479 = vmatprep.mubr.f32.mxu0 0.0
    %480 = vmatmul.mubr.f32.gmra.mrb[0].mxu0 %v17
    %v481 = vpop.f32.mrb[0].mxu0
    %v482 = vadd.f32 0.0, %v481
    %v483 = vpop.f32.mrb[0].mxu0
    %v484 = vadd.f32 0.0, %v483
    %485 = vdwg.mxu0
    %v486 = vmax.f32 %v482, 0.0
    %v487 = vmax.f32 %v484, 0.0
    %v488 = vadd.f32 %v486, %v14
    %v489 = vadd.f32 %v487, %v15
    %v490 = vadd.f32 %v488, %v489
    %491 = vadd.xlane.f32.xlu0 %v490
    %v492 = vpop.xlane.xlu0 %491
    %v493 = vmul.f32 %v492, 0.00390625
    %v494 = vmul.f32 %v488, %v488
    %v495 = vmul.f32 %v489, %v489
    %v496 = vadd.f32 %v494, %v495
    %497 = vadd.xlane.f32.xlu0 %v496
    %v498 = vpop.xlane.xlu0 %497
    %v499 = vmul.f32 %v498, 0.00390625
    %v500 = vmul.f32 %v493, %v493
    %v501 = vsub.f32 %v499, %v500
    %v502 = vmax.f32 %v501, 0.0
    %v503 = vadd.f32 %v502, 1e-05
    %v504 = vrsqrt.pop %v503
    %v505 = vmul.f32 %v18, %v504
    %v506 = vmul.f32 %v493, %v505
    %508 = vrot.lane.b32.xlu0 %v506, 1
    %v509 = vpop.permute.xlu0 %508
    %v511 = vsub.f32 %v18, %v509
    %513 = vset.pattern.permute.xlu0 0
    %514 = vperm.xlu0 %513, %v505
    %v515 = vpop.permute.xlu0 %514
    %v517 = vmul.f32 %v488, %v515
    %v518 = vmul.f32 %v489, %v515
    %520 = vset.pattern.permute.xlu0 1
    %521 = vperm.xlu0 %520, %v511
    %v522 = vpop.permute.xlu0 %521
    %v524 = vadd.f32 %v517, %v522
    %v525 = vadd.f32 %v518, %v522
    %526 = vst [vmem:[#allocation2] sm:$0xff] %v524
    %527 = vst [vmem:[#allocation2 + $0x8] sm:$0xff] %v525
    // Predicated region
    $region10: #{forward_impl.1} parent=1 // pred_check
      _
    $region11: #{forward_impl.1} parent=1 // pred_check_branch
      %529 = sbr.rel (0) target = $region13
    $region12: #{forward_impl.1} parent=1 // pred_region
      %s531 = ssub.s32 256, 256
      %532 = vsyncadd [#allocation3], %s531
      %s534 = sshll.u32 [#allocation2], 4
      %s535 = int_to_ptr.vmem [resolvable:$true] %s534
      %537 = dma.vmem_to_hbm [thread:$0]  %s535, 256, %s2, [#allocation3]
    $region13: #{forward_impl.1} parent=1 // pred_fallthru
      _
    // Predicated region
    $region14: #{forward_impl.1} parent=1 // pred_check
      _
    $region15: #{forward_impl.1} parent=1 // pred_check_branch
      %539 = sbr.rel (0) target = $region17
    $region16: #{forward_impl.1} parent=1 // pred_region
      %540 = dma.done [#allocation3], 256
    $region17: #{forward_impl.1} parent=1 // pred_fallthru
      _
    %541 = vsyncpa [#allocation3], 1

</llo_original>
